<compile_context>
chip_gen: v6e
topology: v6e:2x2x1
jax: 0.10.0
libtpu: 0.0.40
codegen_flags: <defaults>
</compile_context>

<pallas_src>
import functools

import jax
import jax.numpy as jnp
from jax import lax
from jax.experimental import pallas as pl
from jax.experimental.pallas import tpu as pltpu

_LANE = 128
_EPS = 1e-5


def _round_up(n, m):
    return ((n + m - 1) // m) * m


def _rootnode_kernel(x_ref, w1_ref, b1_ref, w2_ref, b2_ref, out_ref,
                     sum_ref, sumsq_ref, *, b_true, tb, eps=_EPS):
    phase = pl.program_id(0)   # 0 = accumulate BN stats, 1 = normalize + output
    tile = pl.program_id(1)    # batch-tile index

    @pl.when(jnp.logical_and(phase == 0, tile == 0))
    def _init():
        sum_ref[...] = jnp.zeros_like(sum_ref)
        sumsq_ref[...] = jnp.zeros_like(sumsq_ref)

    # Linear(hidden -> out) + Tanh.  Recomputed in both phases; this re-reads the
    # (pipelined) x tile instead of round-tripping h through HBM.
    h = jnp.tanh(
        jnp.dot(x_ref[...], w1_ref[...], preferred_element_type=jnp.float32)
        + b1_ref[...]
    )

    @pl.when(phase == 0)
    def _accumulate_stats():
        # Mask out zero-padded batch rows so BN statistics use the true batch.
        row = tile * tb + lax.broadcasted_iota(jnp.int32, h.shape, 0)
        hm = jnp.where(row < b_true, h, 0.0)
        # One-pass statistics: sum and sum-of-squares (single sublane reduce each).
        sum_ref[...] += jnp.sum(hm, axis=0, keepdims=True)
        sumsq_ref[...] += jnp.sum(hm * hm, axis=0, keepdims=True)

    @pl.when(phase == 1)
    def _normalize_and_emit():
        inv_b = 1.0 / float(b_true)
        mean = sum_ref[...] * inv_b
        # var = E[h^2] - mean^2 ; h is tanh-bounded so this is numerically safe.
        var = jnp.maximum(sumsq_ref[...] * inv_b - mean * mean, 0.0)
        inv_std = lax.rsqrt(var + eps)
        h_norm = (h - mean) * inv_std
        # Linear(out -> type) + Tanh; lane-dense (padded to 128) output store.
        y = jnp.dot(h_norm, w2_ref[...], preferred_element_type=jnp.float32)
        out_ref[...] = jnp.tanh(y + b2_ref[...]).astype(out_ref.dtype)


def rootnode_forward(x, w1, b1, w2, b2, *, batch_tile=512):
    """Pallas implementation of RootNode.forward.

    x : [B, hidden_num2] float32
    w1: [hidden_num2, out_num]   (transposed vs. PyTorch's [out, in])
    b1: [out_num] or [1, out_num]
    w2: [out_num, type_num]
    b2: [type_num] or [1, type_num]
    returns (None, predict_out[B, type_num])
    """
    x = x.astype(jnp.float32)
    B, H = x.shape
    Hw, O = w1.shape
    Ow, T = w2.shape
    assert H == Hw and O == Ow

    # Pad feature dims to the 128-lane boundary (zero columns are inert through
    # tanh / BN / matmul / tanh) and the batch to a multiple of the batch tile.
    Hp = _round_up(H, _LANE)
    Op = _round_up(O, _LANE)
    Tp = _round_up(T, _LANE)

    tb = min(_round_up(B, 8), _round_up(batch_tile, 8))
    Bp = _round_up(B, tb)
    nbt = Bp // tb

    xp = jnp.pad(x, ((0, Bp - B), (0, Hp - H)))
    w1p = jnp.pad(w1.astype(jnp.float32), ((0, Hp - H), (0, Op - O)))
    b1p = jnp.pad(b1.astype(jnp.float32).reshape(1, O), ((0, 0), (0, Op - O)))
    w2p = jnp.pad(w2.astype(jnp.float32), ((0, Op - O), (0, Tp - T)))
    b2p = jnp.pad(b2.astype(jnp.float32).reshape(1, T), ((0, 0), (0, Tp - T)))

    # VMEM budget (double-buffered x/out tiles + resident weights + stats),
    # with headroom; keeps the kernel inside v7x's smaller scoped VMEM.
    needed = 4 * (
        2 * tb * Hp + 2 * tb * Tp
        + 2 * (Hp * Op + Op * Tp + Op + Tp)
        + 2 * Op
    )
    vmem_limit = min(max(2 * needed, 4 * 1024 * 1024), 32 * 1024 * 1024)

    kernel = functools.partial(_rootnode_kernel, b_true=B, tb=tb)

    out = pl.pallas_call(
        kernel,
        out_shape=jax.ShapeDtypeStruct((Bp, Tp), jnp.float32),
        grid_spec=pltpu.PrefetchScalarGridSpec(
            num_scalar_prefetch=0,
            grid=(2, nbt),  # (phase, batch tile); batch tiles are pipelined
            in_specs=[
                pl.BlockSpec((tb, Hp), lambda p, i: (i, 0)),   # x: streamed per tile
                pl.BlockSpec((Hp, Op), lambda p, i: (0, 0)),   # W1: VMEM-resident
                pl.BlockSpec((1, Op), lambda p, i: (0, 0)),    # b1: VMEM-resident
                pl.BlockSpec((Op, Tp), lambda p, i: (0, 0)),   # W2: VMEM-resident
                pl.BlockSpec((1, Tp), lambda p, i: (0, 0)),    # b2: VMEM-resident
            ],
            # Phase 0 never writes the output; map all phase-0 steps to block 0 so
            # no stale output blocks are flushed.  Phase 1 writes tile i -> block i.
            out_specs=pl.BlockSpec((tb, Tp), lambda p, i: (i * p, 0)),
            scratch_shapes=[
                pltpu.VMEM((1, Op), jnp.float32),   # sum(h)   per feature
                pltpu.VMEM((1, Op), jnp.float32),   # sum(h^2) per feature
            ],
        ),
        compiler_params=pltpu.CompilerParams(
            # Both axes carry the BN-stat reduction / its consumer -> arbitrary.
            dimension_semantics=("arbitrary", "arbitrary"),
            vmem_limit_bytes=vmem_limit,
        ),
    )(xp, w1p, b1p, w2p, b2p)

    predict_out = out[:B, :T]
    trans_out = None
    return trans_out, predict_out


def init_rootnode_params(key, hidden_num2, out_num, type_num):
    """Deterministic init mimicking nn.Linear's default uniform init."""
    k1, k2, k3, k4 = jax.random.split(key, 4)
    bound1 = 1.0 / jnp.sqrt(hidden_num2)
    bound2 = 1.0 / jnp.sqrt(out_num)
    w1 = jax.random.uniform(k1, (hidden_num2, out_num), jnp.float32, -bound1, bound1)
    b1 = jax.random.uniform(k2, (1, out_num), jnp.float32, -bound1, bound1)
    w2 = jax.random.uniform(k3, (out_num, type_num), jnp.float32, -bound2, bound2)
    b2 = jax.random.uniform(k4, (1, type_num), jnp.float32, -bound2, bound2)
    return w1, b1, w2, b2


def _reference(x, w1, b1, w2, b2):
    h = jnp.tanh(x @ w1 + b1)
    mean = jnp.mean(h, axis=0, keepdims=True)
    var = jnp.mean((h - mean) ** 2, axis=0, keepdims=True)
    h = (h - mean) / jnp.sqrt(var + _EPS)
    return jnp.tanh(h @ w2 + b2)


if __name__ == "__main__":
    key = jax.random.PRNGKey(0)

    # Shapes consistent with the module.  The second case exercises multiple
    # batch tiles plus padded-row masking of the BatchNorm statistics.
    cases = [
        # (B, hidden_num2, out_num, type_num, batch_tile)
        (8, 32, 16, 4, 512),
        (13, 32, 16, 4, 8),
    ]

    for (B, HIDDEN_NUM2, OUT_NUM, TYPE_NUM, BT) in cases:
        kx, kp, key = jax.random.split(key, 3)
        x = jax.random.normal(kx, (B, HIDDEN_NUM2), dtype=jnp.float32)
        w1, b1, w2, b2 = init_rootnode_params(kp, HIDDEN_NUM2, OUT_NUM, TYPE_NUM)

        trans_out, predict_out = rootnode_forward(x, w1, b1, w2, b2, batch_tile=BT)
        predict_out = jax.block_until_ready(predict_out)

        ref = _reference(x, w1, b1, w2, b2)
        assert trans_out is None
        assert predict_out.shape == (B, TYPE_NUM)
        assert jnp.allclose(predict_out, ref, atol=2e-5, rtol=2e-5), (
            f"mismatch for case B={B}: max abs err "
            f"{float(jnp.max(jnp.abs(predict_out - ref)))}"
        )

    print("KERNEL_OK")
</pallas_src>

<mosaic_0001>
module attributes {stable_mosaic.version = 11 : i64} {
  func.func @_rootnode_kernel(%arg0: i32, %arg1: i32, %arg2: memref<8x128xf32, #tpu.memory_space<vmem>>, %arg3: memref<128x128xf32, #tpu.memory_space<vmem>>, %arg4: memref<1x128xf32, #tpu.memory_space<vmem>>, %arg5: memref<128x128xf32, #tpu.memory_space<vmem>>, %arg6: memref<1x128xf32, #tpu.memory_space<vmem>>, %arg7: memref<8x128xf32, #tpu.memory_space<vmem>>, %arg8: memref<1x128xf32, #tpu.memory_space<vmem>>, %arg9: memref<1x128xf32, #tpu.memory_space<vmem>>) attributes {dimension_semantics = [#tpu.dimension_semantics<arbitrary>, #tpu.dimension_semantics<arbitrary>], iteration_bounds = array<i64: 2, 1>, scalar_prefetch = 0 : i64, scratch_operands = 2 : i64, tpu.core_type = #tpu.core_type<tc>, window_params = [{transform_indices = @transform_0, window_bounds = array<i64: 8, 128>}, {pipeline_mode = #tpu.pipeline_mode<synchronous>, transform_indices = @transform_1, window_bounds = array<i64: 128, 128>}, {pipeline_mode = #tpu.pipeline_mode<synchronous>, transform_indices = @transform_2, window_bounds = array<i64: 1, 128>}, {pipeline_mode = #tpu.pipeline_mode<synchronous>, transform_indices = @transform_3, window_bounds = array<i64: 128, 128>}, {pipeline_mode = #tpu.pipeline_mode<synchronous>, transform_indices = @transform_4, window_bounds = array<i64: 1, 128>}, {transform_indices = @transform_5, window_bounds = array<i64: 8, 128>}]} {
    %c0_i32 = arith.constant 0 : i32
    %0 = arith.cmpi eq, %arg0, %c0_i32 : i32
    %c0_i32_0 = arith.constant 0 : i32
    %1 = arith.cmpi eq, %arg1, %c0_i32_0 : i32
    %2 = arith.andi %0, %1 : i1
    %3 = arith.extui %2 : i1 to i32
    %c0_i32_1 = arith.constant 0 : i32
    %4 = arith.cmpi ne, %3, %c0_i32_1 : i32
    scf.if %4 {
      %cst_10 = arith.constant 0.000000e+00 : f32
      %18 = vector.broadcast %cst_10 : f32 to vector<1x128xf32>
      %c0_11 = arith.constant 0 : index
      %c0_12 = arith.constant 0 : index
      %19 = vector.load %arg8[%c0_11, %c0_12] : memref<1x128xf32, #tpu.memory_space<vmem>>, vector<1x128xf32>
      tpu.vector_store %arg8[%c0_11, %c0_12], %18 {strides = array<i32>} : memref<1x128xf32, #tpu.memory_space<vmem>>, vector<1x128xf32>,
      %cst_13 = arith.constant 0.000000e+00 : f32
      %20 = vector.broadcast %cst_13 : f32 to vector<1x128xf32>
      %c0_14 = arith.constant 0 : index
      %c0_15 = arith.constant 0 : index
      %21 = vector.load %arg9[%c0_14, %c0_15] : memref<1x128xf32, #tpu.memory_space<vmem>>, vector<1x128xf32>
      tpu.vector_store %arg9[%c0_14, %c0_15], %20 {strides = array<i32>} : memref<1x128xf32, #tpu.memory_space<vmem>>, vector<1x128xf32>,
    } else {
    }
    %c0 = arith.constant 0 : index
    %c0_2 = arith.constant 0 : index
    %5 = vector.load %arg2[%c0, %c0_2] : memref<8x128xf32, #tpu.memory_space<vmem>>, vector<8x128xf32>
    %c0_3 = arith.constant 0 : index
    %c0_4 = arith.constant 0 : index
    %6 = vector.load %arg3[%c0_3, %c0_4] : memref<128x128xf32, #tpu.memory_space<vmem>>, vector<128x128xf32>
    %cst = arith.constant dense<0.000000e+00> : vector<8x128xf32>
    %7 = tpu.matmul %5, %6, %cst {dimension_numbers = #tpu.dot_dimension_numbers<[1], [0], [0], [1], [0, 0, 1, 1], [], []>} : vector<8x128xf32>, vector<128x128xf32>, vector<8x128xf32> -> vector<8x128xf32>
    %c0_5 = arith.constant 0 : index
    %c0_6 = arith.constant 0 : index
    %8 = vector.load %arg4[%c0_5, %c0_6] : memref<1x128xf32, #tpu.memory_space<vmem>>, vector<1x128xf32>
    %9 = vector.broadcast %8 : vector<1x128xf32> to vector<8x128xf32>
    %10 = arith.addf %7, %9 : vector<8x128xf32>
    %11 = math.tanh %10 : vector<8x128xf32>
    %c0_i32_7 = arith.constant 0 : i32
    %12 = arith.cmpi eq, %arg0, %c0_i32_7 : i32
    %13 = arith.extui %12 : i1 to i32
    %c0_i32_8 = arith.constant 0 : i32
    %14 = arith.cmpi ne, %13, %c0_i32_8 : i32
    scf.if %14 {
      %c8_i32 = arith.constant 8 : i32
      %18 = arith.muli %arg1, %c8_i32 : i32
      %19 = tpu.iota {dimensions = array<i32: 0>} : vector<8x128xi32>
      %20 = vector.broadcast %18 : i32 to vector<8x128xi32>
      %21 = arith.addi %20, %19 : vector<8x128xi32>
      %c8_i32_10 = arith.constant 8 : i32
      %22 = vector.broadcast %c8_i32_10 : i32 to vector<8x128xi32>
      %23 = arith.cmpi slt, %21, %22 : vector<8x128xi32>
      %cst_11 = arith.constant 0.000000e+00 : f32
      %24 = vector.broadcast %cst_11 : f32 to vector<8x128xf32>
      %25 = arith.select %23, %11, %24 : vector<8x128xi1>, vector<8x128xf32>
      %c0_12 = arith.constant 0 : index
      %c0_13 = arith.constant 0 : index
      %26 = vector.load %arg8[%c0_12, %c0_13] : memref<1x128xf32, #tpu.memory_space<vmem>>, vector<1x128xf32>
      %cst_14 = arith.constant dense<0.000000e+00> : vector<128xf32>
      %27 = vector.multi_reduction <add>, %25, %cst_14 [0] : vector<8x128xf32> to vector<128xf32>
      %28 = vector.shape_cast %27 : vector<128xf32> to vector<1x128xf32>
      %29 = arith.addf %26, %28 : vector<1x128xf32>
      %c0_15 = arith.constant 0 : index
      %c0_16 = arith.constant 0 : index
      %30 = vector.load %arg8[%c0_15, %c0_16] : memref<1x128xf32, #tpu.memory_space<vmem>>, vector<1x128xf32>
      tpu.vector_store %arg8[%c0_15, %c0_16], %29 {strides = array<i32>} : memref<1x128xf32, #tpu.memory_space<vmem>>, vector<1x128xf32>,
      %c0_17 = arith.constant 0 : index
      %c0_18 = arith.constant 0 : index
      %31 = vector.load %arg9[%c0_17, %c0_18] : memref<1x128xf32, #tpu.memory_space<vmem>>, vector<1x128xf32>
      %32 = arith.mulf %25, %25 : vector<8x128xf32>
      %cst_19 = arith.constant dense<0.000000e+00> : vector<128xf32>
      %33 = vector.multi_reduction <add>, %32, %cst_19 [0] : vector<8x128xf32> to vector<128xf32>
      %34 = vector.shape_cast %33 : vector<128xf32> to vector<1x128xf32>
      %35 = arith.addf %31, %34 : vector<1x128xf32>
      %c0_20 = arith.constant 0 : index
      %c0_21 = arith.constant 0 : index
      %36 = vector.load %arg9[%c0_20, %c0_21] : memref<1x128xf32, #tpu.memory_space<vmem>>, vector<1x128xf32>
      tpu.vector_store %arg9[%c0_20, %c0_21], %35 {strides = array<i32>} : memref<1x128xf32, #tpu.memory_space<vmem>>, vector<1x128xf32>,
    } else {
    }
    %c1_i32 = arith.constant 1 : i32
    %15 = arith.cmpi eq, %arg0, %c1_i32 : i32
    %16 = arith.extui %15 : i1 to i32
    %c0_i32_9 = arith.constant 0 : i32
    %17 = arith.cmpi ne, %16, %c0_i32_9 : i32
    scf.if %17 {
      %c0_10 = arith.constant 0 : index
      %c0_11 = arith.constant 0 : index
      %18 = vector.load %arg8[%c0_10, %c0_11] : memref<1x128xf32, #tpu.memory_space<vmem>>, vector<1x128xf32>
      %cst_12 = arith.constant 1.250000e-01 : f32
      %19 = vector.broadcast %cst_12 : f32 to vector<1x128xf32>
      %20 = arith.mulf %18, %19 : vector<1x128xf32>
      %c0_13 = arith.constant 0 : index
      %c0_14 = arith.constant 0 : index
      %21 = vector.load %arg9[%c0_13, %c0_14] : memref<1x128xf32, #tpu.memory_space<vmem>>, vector<1x128xf32>
      %cst_15 = arith.constant 1.250000e-01 : f32
      %22 = vector.broadcast %cst_15 : f32 to vector<1x128xf32>
      %23 = arith.mulf %21, %22 : vector<1x128xf32>
      %24 = arith.mulf %20, %20 : vector<1x128xf32>
      %25 = arith.subf %23, %24 : vector<1x128xf32>
      %cst_16 = arith.constant 0.000000e+00 : f32
      %26 = vector.broadcast %cst_16 : f32 to vector<1x128xf32>
      %27 = arith.maximumf %25, %26 : vector<1x128xf32>
      %cst_17 = arith.constant 9.99999974E-6 : f32
      %28 = vector.broadcast %cst_17 : f32 to vector<1x128xf32>
      %29 = arith.addf %27, %28 : vector<1x128xf32>
      %30 = math.rsqrt %29 : vector<1x128xf32>
      %31 = vector.broadcast %20 : vector<1x128xf32> to vector<8x128xf32>
      %32 = arith.subf %11, %31 : vector<8x128xf32>
      %33 = vector.broadcast %30 : vector<1x128xf32> to vector<8x128xf32>
      %34 = arith.mulf %32, %33 : vector<8x128xf32>
      %c0_18 = arith.constant 0 : index
      %c0_19 = arith.constant 0 : index
      %35 = vector.load %arg5[%c0_18, %c0_19] : memref<128x128xf32, #tpu.memory_space<vmem>>, vector<128x128xf32>
      %cst_20 = arith.constant dense<0.000000e+00> : vector<8x128xf32>
      %36 = tpu.matmul %34, %35, %cst_20 {dimension_numbers = #tpu.dot_dimension_numbers<[1], [0], [0], [1], [0, 0, 1, 1], [], []>} : vector<8x128xf32>, vector<128x128xf32>, vector<8x128xf32> -> vector<8x128xf32>
      %c0_21 = arith.constant 0 : index
      %c0_22 = arith.constant 0 : index
      %37 = vector.load %arg6[%c0_21, %c0_22] : memref<1x128xf32, #tpu.memory_space<vmem>>, vector<1x128xf32>
      %38 = vector.broadcast %37 : vector<1x128xf32> to vector<8x128xf32>
      %39 = arith.addf %36, %38 : vector<8x128xf32>
      %40 = math.tanh %39 : vector<8x128xf32>
      %c0_23 = arith.constant 0 : index
      %c0_24 = arith.constant 0 : index
      %41 = vector.load %arg7[%c0_23, %c0_24] : memref<8x128xf32, #tpu.memory_space<vmem>>, vector<8x128xf32>
      tpu.vector_store %arg7[%c0_23, %c0_24], %40 {strides = array<i32>} : memref<8x128xf32, #tpu.memory_space<vmem>>, vector<8x128xf32>,
    } else {
    }
    return
  }
  func.func @transform_0(%arg0: i32, %arg1: i32) -> (i32, i32) {
    %c0_i32 = arith.constant 0 : i32
    %c0_i32_0 = arith.constant 0 : i32
    return %arg1, %c0_i32 : i32, i32
  }
  func.func @transform_1(%arg0: i32, %arg1: i32) -> (i32, i32) {
    %c0_i32 = arith.constant 0 : i32
    %c0_i32_0 = arith.constant 0 : i32
    %c0_i32_1 = arith.constant 0 : i32
    return %c0_i32, %c0_i32_0 : i32, i32
  }
  func.func @transform_2(%arg0: i32, %arg1: i32) -> (i32, i32) {
    %c0_i32 = arith.constant 0 : i32
    %c0_i32_0 = arith.constant 0 : i32
    %c0_i32_1 = arith.constant 0 : i32
    return %c0_i32, %c0_i32_0 : i32, i32
  }
  func.func @transform_3(%arg0: i32, %arg1: i32) -> (i32, i32) {
    %c0_i32 = arith.constant 0 : i32
    %c0_i32_0 = arith.constant 0 : i32
    %c0_i32_1 = arith.constant 0 : i32
    return %c0_i32, %c0_i32_0 : i32, i32
  }
  func.func @transform_4(%arg0: i32, %arg1: i32) -> (i32, i32) {
    %c0_i32 = arith.constant 0 : i32
    %c0_i32_0 = arith.constant 0 : i32
    %c0_i32_1 = arith.constant 0 : i32
    return %c0_i32, %c0_i32_0 : i32, i32
  }
  func.func @transform_5(%arg0: i32, %arg1: i32) -> (i32, i32) {
    %0 = arith.muli %arg1, %arg0 : i32
    %c0_i32 = arith.constant 0 : i32
    %c0_i32_0 = arith.constant 0 : i32
    return %0, %c0_i32 : i32, i32
  }
}

</mosaic_0001>

<llo_original>
// kernel: tpu_custom_call.1
$region0: #{tpu_custom_call.1}
  #allocation0 [shape = 'u32[]', space=smem, size = 0x4, offset = 0x4, fixed_abs, tag = 'smem constant byte address 0x4 - core index']
  #allocation1 [shape = 'u32[144,128]{1,0:T(1,128)}', space=vmem, size = 0x12000, scoped, tag = 'internal scratch']
  #allocation2 [shape = 'f32[1,128]{1,0:T(1,128)}', space=vmem, size = 0x200, scoped, tag = 'scratch operand']
  #allocation3 [shape = 'f32[1,128]{1,0:T(1,128)}', space=vmem, size = 0x200, scoped, tag = 'scratch operand']
  %s0 = inlined_call_operand.hbm [shape: f32[8,128], index: 0, kind: input, shape index: {}]
  %s1 = inlined_call_operand.hbm [shape: f32[128,128], index: 1, kind: input, shape index: {}]
  %s2 = inlined_call_operand.vmem [shape: f32[1,128], index: 2, kind: input, shape index: {}]
  %s3 = inlined_call_operand.hbm [shape: f32[128,128], index: 3, kind: input, shape index: {}]
  %s4 = inlined_call_operand.vmem [shape: f32[1,128], index: 4, kind: input, shape index: {}]
  %s5 = inlined_call_operand.hbm [shape: f32[8,128], index: 5, kind: output, shape index: {}]
  %s6 = sld [smem:[#allocation0]]
  $region77: #{tpu_custom_call.1} parent=0
    _
  %s8 = ssub.s32 1, %s6
  %s9 = scalar_select 0, %s8, %s6
  $region1: #{tpu_custom_call.1} parent=0
    #allocation4 [shape = 'u8[4096]{0}', space=vmem, size = 0x1000, scoped, tag = 'input window, operand 0, single buffered']
    #allocation5 [shape = 's32[2]{0}', space=sflag, size = 0x8, scoped, tag = 'scoped memory for tpu_custom_call.1']
    #allocation6 [shape = 's32[2]{0}', space=sflag, size = 0x8, scoped, tag = 'scoped memory for tpu_custom_call.1']
    #allocation7 [shape = 'u8[65536]{0}', space=vmem, size = 0x10000, scoped, tag = 'input window, operand 1, single buffered']
    #allocation8 [shape = 's32[1]{0}', space=sflag, size = 0x4, scoped, tag = 'scoped memory for tpu_custom_call.1']
    #allocation9 [shape = 'u8[65536]{0}', space=vmem, size = 0x10000, scoped, tag = 'input window, operand 3, single buffered']
    #allocation10 [shape = 'u8[8192]{0}', space=vmem, size = 0x2000, scoped, tag = 'output window, operand 0']
    %10 = vsyncpa [#allocation5], 0
    %11 = vsyncpa [#allocation8], 0
    %12 = vsyncpa [#allocation6], 0
    %s13 = scalar_lea.sflag [#allocation6], 1
    %14 = vsyncpa %s13, 0
    loop: start=0, step=1, limit=4
    $region2: #{tpu_custom_call.1} parent=1 // loop_pre_header
      _
    $region3: #{tpu_custom_call.1} parent=1 // loop_header
      %s16 = sphi 0, %s20
      %p17 = scmp.ge.s32.totalorder %s16, 4
      %s23 = sphi 0, %s35
      %s24 = sphi 0, %s31
      %s25 = sphi 0, %s23
      %s26 = sphi 0, %s24
      %s27 = sphi 0, %s25
      %s28 = sphi 0, %s26
      %s38 = sphi 0, %s40
      %s41 = sphi 0, %s38
      %s42 = sphi 0, %s41
      %s58 = sphi 0, %s42
      %s62 = sphi 0, %s62
      %s64 = sphi 0, %s62
      %s65 = sphi 0, %s64
      %s79 = sphi 0, %s65
      %s83 = sphi 0, %s83
      %s85 = sphi 0, %s83
      %s86 = sphi 0, %s85
      %s100 = sphi 0, %s86
      %s104 = sphi 0, %s104
      %s106 = sphi 0, %s104
      %s107 = sphi 0, %s106
      %s121 = sphi 0, %s107
      %s125 = sphi 0, %s125
      %s127 = sphi 0, %s125
      %s128 = sphi 0, %s127
      %s142 = sphi 0, %s128
      %s150 = sphi 0, %s152
      %s153 = sphi 0, %s150
      %s154 = sphi 0, %s153
      %s170 = sphi 0, %s154
    $region4: #{tpu_custom_call.1} parent=1 // loop_header_branch
      %19 = sbr.rel (%p17) target = $region8
    $region5: #{tpu_custom_call.1} parent=1 // loop_body
      %s21 = ssub.s32 %s16, 1
      %s22 = ssub.s32 %s16, 2
      %s29 = sadd.s32 1, %s24
      %p30 = scmp.ge.s32.totalorder %s29, 1
      %s31 = scalar_select %p30, 0, %s29
      %s32 = sadd.s32 1, %s23
      %s33 = scalar_select %p30, %s32, %s23
      %p34 = scmp.ge.s32.totalorder %s33, 2
      %s35 = scalar_select %p34, 0, %s33
      %s36 = ssub.s32 %s24, %s31
      %p37 = scmp.eq.s32.totalorder %s36, 0
      %s39 = sadd.s32 %s38, 1
      %s40 = scalar_select %p37, %s38, %s39
      %p43 = pneg %p37
      %p44 = scmp.eq.s32.totalorder %s16, 1
      %p45 = por %p43, %p44
      %p46 = scmp.ne.s32.totalorder %s38, %s41
      %p47 = scmp.eq.s32.totalorder %s16, 0
      %p48 = por %p46, %p47
      %p49 = scmp.ne.s32.totalorder %s38, %s41
      %p50 = scmp.eq.s32.totalorder %s21, 1
      %p51 = por %p49, %p50
      %p52 = scmp.ne.s32.totalorder %s41, %s42
      %p53 = scmp.eq.s32.totalorder %s21, 0
      %p54 = por %p52, %p53
      %p55 = scmp.ne.s32.totalorder %s41, %s42
      %p56 = scmp.eq.s32.totalorder %s22, 1
      %p57 = por %p55, %p56
      %p59 = scmp.ne.s32.totalorder %s42, %s58
      %p60 = scmp.eq.s32.totalorder %s22, 0
      %p61 = por %p59, %p60
      %s63 = sadd.s32 %s62, 1
      %p66 = scmp.eq.s32.totalorder %s16, 1
      %p67 = scmp.ne.s32.totalorder %s62, %s64
      %p68 = scmp.eq.s32.totalorder %s16, 0
      %p69 = por %p67, %p68
      %p70 = scmp.ne.s32.totalorder %s62, %s64
      %p71 = scmp.eq.s32.totalorder %s21, 1
      %p72 = por %p70, %p71
      %p73 = scmp.ne.s32.totalorder %s64, %s65
      %p74 = scmp.eq.s32.totalorder %s21, 0
      %p75 = por %p73, %p74
      %p76 = scmp.ne.s32.totalorder %s64, %s65
      %p77 = scmp.eq.s32.totalorder %s22, 1
      %p78 = por %p76, %p77
      %p80 = scmp.ne.s32.totalorder %s65, %s79
      %p81 = scmp.eq.s32.totalorder %s22, 0
      %p82 = por %p80, %p81
      %s84 = sadd.s32 %s83, 1
      %p87 = scmp.eq.s32.totalorder %s16, 1
      %p88 = scmp.ne.s32.totalorder %s83, %s85
      %p89 = scmp.eq.s32.totalorder %s16, 0
      %p90 = por %p88, %p89
      %p91 = scmp.ne.s32.totalorder %s83, %s85
      %p92 = scmp.eq.s32.totalorder %s21, 1
      %p93 = por %p91, %p92
      %p94 = scmp.ne.s32.totalorder %s85, %s86
      %p95 = scmp.eq.s32.totalorder %s21, 0
      %p96 = por %p94, %p95
      %p97 = scmp.ne.s32.totalorder %s85, %s86
      %p98 = scmp.eq.s32.totalorder %s22, 1
      %p99 = por %p97, %p98
      %p101 = scmp.ne.s32.totalorder %s86, %s100
      %p102 = scmp.eq.s32.totalorder %s22, 0
      %p103 = por %p101, %p102
      %s105 = sadd.s32 %s104, 1
      %p108 = scmp.eq.s32.totalorder %s16, 1
      %p109 = scmp.ne.s32.totalorder %s104, %s106
      %p110 = scmp.eq.s32.totalorder %s16, 0
      %p111 = por %p109, %p110
      %p112 = scmp.ne.s32.totalorder %s104, %s106
      %p113 = scmp.eq.s32.totalorder %s21, 1
      %p114 = por %p112, %p113
      %p115 = scmp.ne.s32.totalorder %s106, %s107
      %p116 = scmp.eq.s32.totalorder %s21, 0
      %p117 = por %p115, %p116
      %p118 = scmp.ne.s32.totalorder %s106, %s107
      %p119 = scmp.eq.s32.totalorder %s22, 1
      %p120 = por %p118, %p119
      %p122 = scmp.ne.s32.totalorder %s107, %s121
      %p123 = scmp.eq.s32.totalorder %s22, 0
      %p124 = por %p122, %p123
      %s126 = sadd.s32 %s125, 1
      %p129 = scmp.eq.s32.totalorder %s16, 1
      %p130 = scmp.ne.s32.totalorder %s125, %s127
      %p131 = scmp.eq.s32.totalorder %s16, 0
      %p132 = por %p130, %p131
      %p133 = scmp.ne.s32.totalorder %s125, %s127
      %p134 = scmp.eq.s32.totalorder %s21, 1
      %p135 = por %p133, %p134
      %p136 = scmp.ne.s32.totalorder %s127, %s128
      %p137 = scmp.eq.s32.totalorder %s21, 0
      %p138 = por %p136, %p137
      %p139 = scmp.ne.s32.totalorder %s127, %s128
      %p140 = scmp.eq.s32.totalorder %s22, 1
      %p141 = por %p139, %p140
      %p143 = scmp.ne.s32.totalorder %s128, %s142
      %p144 = scmp.eq.s32.totalorder %s22, 0
      %p145 = por %p143, %p144
      %s146 = smul.u32 %s24, %s23
      %s147 = smul.u32 %s31, %s35
      %s148 = ssub.s32 %s146, %s147
      %p149 = scmp.eq.s32.totalorder %s148, 0
      %s151 = sadd.s32 %s150, 1
      %s152 = scalar_select %p149, %s150, %s151
      %p155 = pneg %p149
      %p156 = scmp.eq.s32.totalorder %s16, 1
      %p157 = por %p155, %p156
      %p158 = scmp.ne.s32.totalorder %s150, %s153
      %p159 = scmp.eq.s32.totalorder %s16, 0
      %p160 = por %p158, %p159
      %p161 = scmp.ne.s32.totalorder %s150, %s153
      %p162 = scmp.eq.s32.totalorder %s21, 1
      %p163 = por %p161, %p162
      %p164 = scmp.ne.s32.totalorder %s153, %s154
      %p165 = scmp.eq.s32.totalorder %s21, 0
      %p166 = por %p164, %p165
      %p167 = scmp.ne.s32.totalorder %s153, %s154
      %p168 = scmp.eq.s32.totalorder %s22, 1
      %p169 = por %p167, %p168
      %p171 = scmp.ne.s32.totalorder %s154, %s170
      %p172 = scmp.eq.s32.totalorder %s22, 0
      %p173 = por %p171, %p172
      %p174 = scmp.le.s32.totalorder 1, %s16
      %p175 = scmp.lt.s32.totalorder %s16, 3
      %p176 = pnand %p174, %p175
      %p177 = pneg %p176
      // Predicated region
      $region9: #{tpu_custom_call.1} parent=5 // pred_check
        _
      $region10: #{tpu_custom_call.1} parent=5 // pred_check_branch
        %179 = sbr.rel (%p176) target = $region12
      $region11: #{tpu_custom_call.1} parent=5 // pred_region
        %s180 = ssub.s32 %s16, 1
        // Predicated region
        $region13: #{tpu_custom_call.1} parent=11 // pred_check
          %p181 = pneg %p54
        $region14: #{tpu_custom_call.1} parent=11 // pred_check_branch
          %183 = sbr.rel (%p181) target = $region16
        $region15: #{tpu_custom_call.1} parent=11 // pred_region
          %s185 = ssub.s32 128, 128
          %186 = vsyncadd [#allocation5], %s185
          %s187 = smul.addr %s26, 128
          %s188 = scalar_lea.hbm %s0, %s187
          %s190 = sshll.u32 [#allocation4], 4
          %s191 = int_to_ptr.vmem [resolvable:$true] %s190
          %193 = dma.hbm_to_vmem [thread:$0]  %s188, 128, %s191, [#allocation5]
        $region16: #{tpu_custom_call.1} parent=11 // pred_fallthru
          _
        // Predicated region
        $region17: #{tpu_custom_call.1} parent=11 // pred_check
          %p194 = pneg %p75
        $region18: #{tpu_custom_call.1} parent=11 // pred_check_branch
          %196 = sbr.rel (%p194) target = $region20
        $region19: #{tpu_custom_call.1} parent=11 // pred_region
          %s198 = ssub.s32 2048, 2048
          %199 = vsyncadd [#allocation8], %s198
          %s200 = sshll.u32 [#allocation7], 4
          %s201 = int_to_ptr.vmem [resolvable:$true] %s200
          %206 = dma.hbm_to_vmem [thread:$0]  %s1, 2048, %s201, [#allocation8], 128, 128, 8
        $region20: #{tpu_custom_call.1} parent=11 // pred_fallthru
          _
        // Predicated region
        $region21: #{tpu_custom_call.1} parent=11 // pred_check
          %p207 = pneg %p96
        $region22: #{tpu_custom_call.1} parent=11 // pred_check_branch
          %209 = sbr.rel (%p207) target = $region24
        $region23: #{tpu_custom_call.1} parent=11 // pred_region
          _
        $region24: #{tpu_custom_call.1} parent=11 // pred_fallthru
          _
        // Predicated region
        $region25: #{tpu_custom_call.1} parent=11 // pred_check
          %p210 = pneg %p117
        $region26: #{tpu_custom_call.1} parent=11 // pred_check_branch
          %212 = sbr.rel (%p210) target = $region28
        $region27: #{tpu_custom_call.1} parent=11 // pred_region
          %s214 = ssub.s32 2048, 2048
          %215 = vsyncadd [#allocation8], %s214
          %s216 = sshll.u32 [#allocation9], 4
          %s217 = int_to_ptr.vmem [resolvable:$true] %s216
          %222 = dma.hbm_to_vmem [thread:$0]  %s3, 2048, %s217, [#allocation8], 128, 128, 8
        $region28: #{tpu_custom_call.1} parent=11 // pred_fallthru
          _
        // Predicated region
        $region29: #{tpu_custom_call.1} parent=11 // pred_check
          %p223 = pneg %p138
        $region30: #{tpu_custom_call.1} parent=11 // pred_check_branch
          %225 = sbr.rel (%p223) target = $region32
        $region31: #{tpu_custom_call.1} parent=11 // pred_region
          _
        $region32: #{tpu_custom_call.1} parent=11 // pred_fallthru
          _
      $region12: #{tpu_custom_call.1} parent=5 // pred_fallthru
        _
      %p226 = scmp.lt.s32.totalorder %s16, 2
      // Predicated region
      $region33: #{tpu_custom_call.1} parent=5 // pred_check
        %p227 = pneg %p226
      $region34: #{tpu_custom_call.1} parent=5 // pred_check_branch
        %229 = sbr.rel (%p227) target = $region36
      $region35: #{tpu_custom_call.1} parent=5 // pred_region
        _
      $region36: #{tpu_custom_call.1} parent=5 // pred_fallthru
        _
      %p230 = scmp.le.s32.totalorder 1, %s16
      %p231 = scmp.lt.s32.totalorder %s16, 3
      %p232 = pnand %p230, %p231
      %p233 = pneg %p232
      // Predicated region
      $region37: #{tpu_custom_call.1} parent=5 // pred_check
        _
      $region38: #{tpu_custom_call.1} parent=5 // pred_check_branch
        %235 = sbr.rel (%p232) target = $region40
      $region39: #{tpu_custom_call.1} parent=5 // pred_region
        %s236 = ssub.s32 %s16, 1
        // Predicated region
        $region41: #{tpu_custom_call.1} parent=39 // pred_check
          %p237 = pneg %p54
        $region42: #{tpu_custom_call.1} parent=39 // pred_check_branch
          %239 = sbr.rel (%p237) target = $region44
        $region43: #{tpu_custom_call.1} parent=39 // pred_region
          %240 = dma.done [#allocation5], 128
        $region44: #{tpu_custom_call.1} parent=39 // pred_fallthru
          _
        // Predicated region
        $region45: #{tpu_custom_call.1} parent=39 // pred_check
          %p241 = pneg %p75
        $region46: #{tpu_custom_call.1} parent=39 // pred_check_branch
          %243 = sbr.rel (%p241) target = $region48
        $region47: #{tpu_custom_call.1} parent=39 // pred_region
          %244 = dma.done [#allocation8], 2048
        $region48: #{tpu_custom_call.1} parent=39 // pred_fallthru
          _
        // Predicated region
        $region49: #{tpu_custom_call.1} parent=39 // pred_check
          %p245 = pneg %p117
        $region50: #{tpu_custom_call.1} parent=39 // pred_check_branch
          %247 = sbr.rel (%p245) target = $region52
        $region51: #{tpu_custom_call.1} parent=39 // pred_region
          %248 = dma.done [#allocation8], 2048
        $region52: #{tpu_custom_call.1} parent=39 // pred_fallthru
          _
        %p249 = pneg %p54
        %p250 = pneg %p51
        %p251 = pneg %p75
        %p252 = pneg %p72
        %p253 = pneg %p96
        %p254 = pneg %p93
        %p255 = pneg %p117
        %p256 = pneg %p114
        %p257 = pneg %p138
        %p258 = pneg %p135
        %p259 = pneg %p166
        %p260 = pneg %p163
        %s261 = sand.u32 %s153, 1
        %s262 = scalar_lea.sflag [#allocation6], %s261
        %s263 = sand.u32 %s153, 1
        %s264 = smul.addr %s263, 8
        %s265 = scalar_lea.vmem [#allocation10], %s264
        %s266 = smul.u32 %s26, %s25
        %p267 = scmp.eq.s32.totalorder %s25, 0
        %p268 = scmp.eq.s32.totalorder %s26, 0
        %p269 = pnand %p267, %p268
        %p270 = pneg %p269
        // Predicated region
        $region53: #{tpu_custom_call.1} parent=39 // pred_check
          _
        $region54: #{tpu_custom_call.1} parent=39 // pred_check_branch
          %272 = sbr.rel (%p269) target = $region56
        $region55: #{tpu_custom_call.1} parent=39 // pred_region
          %273 = vst [vmem:[#allocation2] sm:$0x1] 0.0
          %274 = vst [vmem:[#allocation3] sm:$0x1] 0.0
        $region56: #{tpu_custom_call.1} parent=39 // pred_fallthru
          _
        %v275 = vld [vmem:[#allocation4] sm:$0xff]
        %v276 = vld [vmem:[#allocation7] sm:$0xff]
        %v277 = vld [vmem:[#allocation7 + $0x8] sm:$0xff]
        %v278 = vld [vmem:[#allocation7 + $0x10] sm:$0xff]
        %v279 = vld [vmem:[#allocation7 + $0x18] sm:$0xff]
        %v280 = vld [vmem:[#allocation7 + $0x20] sm:$0xff]
        %v281 = vld [vmem:[#allocation7 + $0x28] sm:$0xff]
        %v282 = vld [vmem:[#allocation7 + $0x30] sm:$0xff]
        %v283 = vld [vmem:[#allocation7 + $0x38] sm:$0xff]
        %v284 = vld [vmem:[#allocation7 + $0x40] sm:$0xff]
        %v285 = vld [vmem:[#allocation7 + $0x48] sm:$0xff]
        %v286 = vld [vmem:[#allocation7 + $0x50] sm:$0xff]
        %v287 = vld [vmem:[#allocation7 + $0x58] sm:$0xff]
        %v288 = vld [vmem:[#allocation7 + $0x60] sm:$0xff]
        %v289 = vld [vmem:[#allocation7 + $0x68] sm:$0xff]
        %v290 = vld [vmem:[#allocation7 + $0x70] sm:$0xff]
        %v291 = vld [vmem:[#allocation7 + $0x78] sm:$0xff]
        %v292 = vld [vmem:[%s2] sm:$0x1]
        %v294 = vlaneseq
        %v295 = vshrl.u32 %v294, 7
        %v296 = vsub.s32 0, %v295
        %v297 = vrot.slane %v292, %v296
        %299 = vmatprep.subr.mxu0 0.0
        %300 = vmatpush1.msra.mxu0 %v291
        %301 = vmatprep.subr.mxu0 0.0
        %302 = vmatpush1.msra.mxu0 %v290
        %303 = vmatprep.subr.mxu0 0.0
        %304 = vmatpush1.msra.mxu0 %v289
        %305 = vmatprep.subr.mxu0 0.0
        %306 = vmatpush1.msra.mxu0 %v288
        %307 = vmatprep.subr.mxu0 0.0
        %308 = vmatpush1.msra.mxu0 %v287
        %309 = vmatprep.subr.mxu0 0.0
        %310 = vmatpush1.msra.mxu0 %v286
        %311 = vmatprep.subr.mxu0 0.0
        %312 = vmatpush1.msra.mxu0 %v285
        %313 = vmatprep.subr.mxu0 0.0
        %314 = vmatpush1.msra.mxu0 %v284
        %315 = vmatprep.subr.mxu0 0.0
        %316 = vmatpush1.msra.mxu0 %v283
        %317 = vmatprep.subr.mxu0 0.0
        %318 = vmatpush1.msra.mxu0 %v282
        %319 = vmatprep.subr.mxu0 0.0
        %320 = vmatpush1.msra.mxu0 %v281
        %321 = vmatprep.subr.mxu0 0.0
        %322 = vmatpush1.msra.mxu0 %v280
        %323 = vmatprep.subr.mxu0 0.0
        %324 = vmatpush1.msra.mxu0 %v279
        %325 = vmatprep.subr.mxu0 0.0
        %326 = vmatpush1.msra.mxu0 %v278
        %327 = vmatprep.subr.mxu0 0.0
        %328 = vmatpush1.msra.mxu0 %v277
        %329 = vmatprep.subr.mxu0 0.0
        %330 = vmatpush1.msra.mxu0 %v276
        %331 = vmatprep.subr.mxu0 0.0
        %332 = vmatpush2.msra.mxu0 0.0
        %333 = vmatprep.subr.mxu0 0.0
        %334 = vmatpush2.msra.mxu0 0.0
        %335 = vmatprep.subr.mxu0 0.0
        %336 = vmatpush2.msra.mxu0 0.0
        %337 = vmatprep.subr.mxu0 0.0
        %338 = vmatpush2.msra.mxu0 0.0
        %339 = vmatprep.subr.mxu0 0.0
        %340 = vmatpush2.msra.mxu0 0.0
        %341 = vmatprep.subr.mxu0 0.0
        %342 = vmatpush2.msra.mxu0 0.0
        %343 = vmatprep.subr.mxu0 0.0
        %344 = vmatpush2.msra.mxu0 0.0
        %345 = vmatprep.subr.mxu0 0.0
        %346 = vmatpush2.msra.mxu0 0.0
        %347 = vmatprep.subr.mxu0 0.0
        %348 = vmatpush2.msra.mxu0 0.0
        %349 = vmatprep.subr.mxu0 0.0
        %350 = vmatpush2.msra.mxu0 0.0
        %351 = vmatprep.subr.mxu0 0.0
        %352 = vmatpush2.msra.mxu0 0.0
        %353 = vmatprep.subr.mxu0 0.0
        %354 = vmatpush2.msra.mxu0 0.0
        %355 = vmatprep.subr.mxu0 0.0
        %356 = vmatpush2.msra.mxu0 0.0
        %357 = vmatprep.subr.mxu0 0.0
        %358 = vmatpush2.msra.mxu0 0.0
        %359 = vmatprep.subr.mxu0 0.0
        %360 = vmatpush2.msra.mxu0 0.0
        %361 = vmatprep.subr.mxu0 0.0
        %362 = vmatpush2.msra.mxu0 0.0
        %363 = vmatprep.mubr.f32.mxu0 0.0
        %364 = vmatmul.mubr.f32.gmra.mxu0 %v275
        %v365 = vpop.f32.mrf.mxu0
        %v366 = vadd.f32 %v297, %v365
        %v367 = vpop.f32.mrf.mxu0
        %368 = vdwg.mxu0
        %v369 = vtanh.pop %v366
        // Predicated region
        $region57: #{tpu_custom_call.1} parent=39 // pred_check
          %p370 = pneg %p267
        $region58: #{tpu_custom_call.1} parent=39 // pred_check_branch
          %372 = sbr.rel (%p370) target = $region60
        $region59: #{tpu_custom_call.1} parent=39 // pred_region
          %s373 = smul.u32 %s26, 8
          %v374 = vlaneseq
          %v375 = vshrl.u32 %v374, 7
          %v376 = vstv %s373
          %v377 = vadd.s32 %v376, %v375
          %vm378 = vcmp.lt.s32.totalorder %v377, 8
          %v379 = vsel %vm378, %v369, 0.0
          %v380 = vld [vmem:[#allocation2] sm:$0x1]
          %v381 = vrot.slane %v379, 4
          %v382 = vadd.f32 %v379, %v381
          %v383 = vrot.slane %v382, 2
          %v384 = vadd.f32 %v382, %v383
          %v385 = vrot.slane %v384, 1
          %v386 = vadd.f32 %v384, %v385
          %v387 = vadd.f32 %v380, %v386
          %388 = vst [vmem:[#allocation2] sm:$0x1] %v387
          %v389 = vld [vmem:[#allocation3] sm:$0x1]
          %v390 = vmul.f32 %v379, %v379
          %v391 = vrot.slane %v390, 4
          %v392 = vadd.f32 %v390, %v391
          %v393 = vrot.slane %v392, 2
          %v394 = vadd.f32 %v392, %v393
          %v395 = vrot.slane %v394, 1
          %v396 = vadd.f32 %v394, %v395
          %v397 = vadd.f32 %v389, %v396
          %398 = vst [vmem:[#allocation3] sm:$0x1] %v397
        $region60: #{tpu_custom_call.1} parent=39 // pred_fallthru
          _
        %p399 = scmp.eq.s32.totalorder %s25, 1
        // Predicated region
        $region61: #{tpu_custom_call.1} parent=39 // pred_check
          %p400 = pneg %p399
        $region62: #{tpu_custom_call.1} parent=39 // pred_check_branch
          %402 = sbr.rel (%p400) target = $region64
        $region63: #{tpu_custom_call.1} parent=39 // pred_region
          %v403 = vld [vmem:[#allocation2] sm:$0x1]
          %v404 = vmul.f32 %v403, 0.125
          %v405 = vld [vmem:[#allocation3] sm:$0x1]
          %v406 = vmul.f32 %v405, 0.125
          %v407 = vmul.f32 %v404, %v404
          %v408 = vsub.f32 %v406, %v407
          %v409 = vmax.f32 %v408, 0.0
          %v410 = vadd.f32 %v409, 1e-05
          %v411 = vrsqrt.pop %v410
          %v413 = vlaneseq
          %v414 = vshrl.u32 %v413, 7
          %v415 = vsub.s32 0, %v414
          %v416 = vrot.slane %v404, %v415
          %v418 = vsub.f32 %v369, %v416
          %v420 = vlaneseq
          %v421 = vshrl.u32 %v420, 7
          %v422 = vsub.s32 0, %v421
          %v423 = vrot.slane %v411, %v422
          %v425 = vmul.f32 %v418, %v423
          %v426 = vld [vmem:[#allocation9] sm:$0xff]
          %v427 = vld [vmem:[#allocation9 + $0x8] sm:$0xff]
          %v428 = vld [vmem:[#allocation9 + $0x10] sm:$0xff]
          %v429 = vld [vmem:[#allocation9 + $0x18] sm:$0xff]
          %v430 = vld [vmem:[#allocation9 + $0x20] sm:$0xff]
          %v431 = vld [vmem:[#allocation9 + $0x28] sm:$0xff]
          %v432 = vld [vmem:[#allocation9 + $0x30] sm:$0xff]
          %v433 = vld [vmem:[#allocation9 + $0x38] sm:$0xff]
          %v434 = vld [vmem:[#allocation9 + $0x40] sm:$0xff]
          %v435 = vld [vmem:[#allocation9 + $0x48] sm:$0xff]
          %v436 = vld [vmem:[#allocation9 + $0x50] sm:$0xff]
          %v437 = vld [vmem:[#allocation9 + $0x58] sm:$0xff]
          %v438 = vld [vmem:[#allocation9 + $0x60] sm:$0xff]
          %v439 = vld [vmem:[#allocation9 + $0x68] sm:$0xff]
          %v440 = vld [vmem:[#allocation9 + $0x70] sm:$0xff]
          %v441 = vld [vmem:[#allocation9 + $0x78] sm:$0xff]
          %v442 = vld [vmem:[%s4] sm:$0x1]
          %v444 = vlaneseq
          %v445 = vshrl.u32 %v444, 7
          %v446 = vsub.s32 0, %v445
          %v447 = vrot.slane %v442, %v446
          %449 = vmatprep.subr.mxu0 0.0
          %450 = vmatpush1.msra.mxu0 %v441
          %451 = vmatprep.subr.mxu0 0.0
          %452 = vmatpush1.msra.mxu0 %v440
          %453 = vmatprep.subr.mxu0 0.0
          %454 = vmatpush1.msra.mxu0 %v439
          %455 = vmatprep.subr.mxu0 0.0
          %456 = vmatpush1.msra.mxu0 %v438
          %457 = vmatprep.subr.mxu0 0.0
          %458 = vmatpush1.msra.mxu0 %v437
          %459 = vmatprep.subr.mxu0 0.0
          %460 = vmatpush1.msra.mxu0 %v436
          %461 = vmatprep.subr.mxu0 0.0
          %462 = vmatpush1.msra.mxu0 %v435
          %463 = vmatprep.subr.mxu0 0.0
          %464 = vmatpush1.msra.mxu0 %v434
          %465 = vmatprep.subr.mxu0 0.0
          %466 = vmatpush1.msra.mxu0 %v433
          %467 = vmatprep.subr.mxu0 0.0
          %468 = vmatpush1.msra.mxu0 %v432
          %469 = vmatprep.subr.mxu0 0.0
          %470 = vmatpush1.msra.mxu0 %v431
          %471 = vmatprep.subr.mxu0 0.0
          %472 = vmatpush1.msra.mxu0 %v430
          %473 = vmatprep.subr.mxu0 0.0
          %474 = vmatpush1.msra.mxu0 %v429
          %475 = vmatprep.subr.mxu0 0.0
          %476 = vmatpush1.msra.mxu0 %v428
          %477 = vmatprep.subr.mxu0 0.0
          %478 = vmatpush1.msra.mxu0 %v427
          %479 = vmatprep.subr.mxu0 0.0
          %480 = vmatpush1.msra.mxu0 %v426
          %481 = vmatprep.subr.mxu0 0.0
          %482 = vmatpush2.msra.mxu0 0.0
          %483 = vmatprep.subr.mxu0 0.0
          %484 = vmatpush2.msra.mxu0 0.0
          %485 = vmatprep.subr.mxu0 0.0
          %486 = vmatpush2.msra.mxu0 0.0
          %487 = vmatprep.subr.mxu0 0.0
          %488 = vmatpush2.msra.mxu0 0.0
          %489 = vmatprep.subr.mxu0 0.0
          %490 = vmatpush2.msra.mxu0 0.0
          %491 = vmatprep.subr.mxu0 0.0
          %492 = vmatpush2.msra.mxu0 0.0
          %493 = vmatprep.subr.mxu0 0.0
          %494 = vmatpush2.msra.mxu0 0.0
          %495 = vmatprep.subr.mxu0 0.0
          %496 = vmatpush2.msra.mxu0 0.0
          %497 = vmatprep.subr.mxu0 0.0
          %498 = vmatpush2.msra.mxu0 0.0
          %499 = vmatprep.subr.mxu0 0.0
          %500 = vmatpush2.msra.mxu0 0.0
          %501 = vmatprep.subr.mxu0 0.0
          %502 = vmatpush2.msra.mxu0 0.0
          %503 = vmatprep.subr.mxu0 0.0
          %504 = vmatpush2.msra.mxu0 0.0
          %505 = vmatprep.subr.mxu0 0.0
          %506 = vmatpush2.msra.mxu0 0.0
          %507 = vmatprep.subr.mxu0 0.0
          %508 = vmatpush2.msra.mxu0 0.0
          %509 = vmatprep.subr.mxu0 0.0
          %510 = vmatpush2.msra.mxu0 0.0
          %511 = vmatprep.subr.mxu0 0.0
          %512 = vmatpush2.msra.mxu0 0.0
          %513 = vmatprep.mubr.f32.mxu0 0.0
          %514 = vmatmul.mubr.f32.gmra.mxu0 %v425
          %v515 = vpop.f32.mrf.mxu0
          %v516 = vadd.f32 %v447, %v515
          %v517 = vpop.f32.mrf.mxu0
          %518 = vdwg.mxu0
          %v519 = vtanh.pop %v516
          %520 = vst [vmem:[%s265] sm:$0xff] %v519
        $region64: #{tpu_custom_call.1} parent=39 // pred_fallthru
          _
        %s521 = sand.u32 %s153, 1
        %s522 = scalar_lea.sflag [#allocation6], %s521
        %s523 = sand.u32 %s153, 1
        %s524 = smul.addr %s523, 8
        %s525 = scalar_lea.vmem [#allocation10], %s524
        // Predicated region
        $region65: #{tpu_custom_call.1} parent=39 // pred_check
          %p526 = pneg %p163
        $region66: #{tpu_custom_call.1} parent=39 // pred_check_branch
          %528 = sbr.rel (%p526) target = $region68
        $region67: #{tpu_custom_call.1} parent=39 // pred_region
          %s529 = smul.u32 %s26, %s25
          %s531 = ssub.s32 128, 128
          %532 = vsyncadd %s522, %s531
          %s533 = smul.addr %s529, 128
          %s534 = scalar_lea.hbm %s5, %s533
          %s536 = sshll.u32 %s525, 4
          %s537 = int_to_ptr.vmem [resolvable:$true] %s536
          %539 = dma.vmem_to_hbm [thread:$0]  %s537, 128, %s534, %s522
        $region68: #{tpu_custom_call.1} parent=39 // pred_fallthru
          _
      $region40: #{tpu_custom_call.1} parent=5 // pred_fallthru
        _
      %p540 = scmp.le.s32.totalorder 2, %s16
      // Predicated region
      $region69: #{tpu_custom_call.1} parent=5 // pred_check
        %p541 = pneg %p540
      $region70: #{tpu_custom_call.1} parent=5 // pred_check_branch
        %543 = sbr.rel (%p541) target = $region72
      $region71: #{tpu_custom_call.1} parent=5 // pred_region
        %s544 = ssub.s32 %s16, 2
        // Predicated region
        $region73: #{tpu_custom_call.1} parent=71 // pred_check
          %p545 = pneg %p169
        $region74: #{tpu_custom_call.1} parent=71 // pred_check_branch
          %547 = sbr.rel (%p545) target = $region76
        $region75: #{tpu_custom_call.1} parent=71 // pred_region
          %s548 = sand.u32 %s154, 1
          %s549 = scalar_lea.sflag [#allocation6], %s548
          %s550 = sand.u32 %s154, 1
          %s551 = smul.addr %s550, 8
          %s552 = scalar_lea.vmem [#allocation10], %s551
          %553 = dma.done %s549, 128
        $region76: #{tpu_custom_call.1} parent=71 // pred_fallthru
          _
      $region72: #{tpu_custom_call.1} parent=5 // pred_fallthru
        _
    $region6: #{tpu_custom_call.1} parent=1 // loop_footer
      %s20 = sadd.s32 1, %s16
    $region7: #{tpu_custom_call.1} parent=1 // loop_footer_branch
      %15 = sbr.rel target = $region3
    $region8: #{tpu_custom_call.1} parent=1 // loop_exit
      _
    %554 = vsyncpa [#allocation5], 1
    %s555 = scalar_lea.sflag [#allocation5], 1
    %556 = vsyncpa %s555, 1
    %557 = vsyncpa [#allocation8], 1
    %558 = vsyncpa [#allocation6], 1
    %s559 = scalar_lea.sflag [#allocation6], 1
    %560 = vsyncpa %s559, 1

</llo_original>
